<compile_context>
chip_gen: v7x
topology: tpu7x:2x2x1
jax: 0.10.0
libtpu: 0.0.40
codegen_flags: <defaults>
</compile_context>

<pallas_src>
import jax
import jax.numpy as jnp
from jax.experimental import pallas as pl
from jax.experimental.pallas import tpu as pltpu


# ---------------------------------------------------------------------------
# Kernel
# ---------------------------------------------------------------------------
def _adjust_kernel(w_ref, b_ref, x_ref, o_ref):
    # w_ref: (Cout, Cin)        folded conv weight (x dtype)
    # b_ref: (Cout, 1)  f32     folded BN bias
    # x_ref: (Bblk, Cin, T)     input tile
    # o_ref: (Bblk, Cout, T)    output tile
    w = w_ref[...]
    b = b_ref[...]
    # Bblk is a small static count -> unrolled; each image is an independent
    # (Cout,Cin)@(Cin,T) MXU matmul with f32 accumulation + folded-BN bias add.
    for i in range(x_ref.shape[0]):
        y = jnp.dot(w, x_ref[i], preferred_element_type=jnp.float32)
        o_ref[i] = (y + b).astype(o_ref.dtype)


# ---------------------------------------------------------------------------
# Block planning (per-generation VMEM budget, batch blocking, >=2 grid steps)
# ---------------------------------------------------------------------------
def _vmem_capacity_bytes():
    try:
        return int(pltpu.get_tpu_info().vmem_capacity_bytes)
    except Exception:
        return 64 << 20  # conservative: v7x per-TC VMEM


def _plan_blocks(n, cin, cout, hw, itemsize, max_tile_cols):
    vmem_cap = _vmem_capacity_bytes()

    # Half of VMEM for the double-buffered (x + out) pipeline blocks.
    pipe_budget = vmem_cap // 2
    per_col_bytes = 2 * (cin + cout) * itemsize          # double-buffered column of x+out
    cols_cap = max(128, (pipe_budget // per_col_bytes) // 128 * 128)
    cols_cap = min(cols_cap, max_tile_cols)

    if hw <= cols_cap:
        # Whole spatial extent in one block (always a legal block size).
        tile = hw
        # Batch-block several images per grid step to amortize per-step overhead.
        bblk_cap = min(16, max(1, cols_cap // max(hw, 128)))
        bblk = max(d for d in range(1, min(n, bblk_cap) + 1) if n % d == 0)
    else:
        bblk = 1
        # Prefer a tile that divides HW (no masked-store edge block), but don't
        # shrink below half the cap just to find a divisor.
        tile = cols_cap
        for t in range(cols_cap, max(128, cols_cap // 2) - 1, -128):
            if hw % t == 0:
                tile = t
                break

    # v7x megacore: make sure the grid has >= 2 steps so both TensorCores get work.
    if pl.cdiv(n, bblk) * pl.cdiv(hw, tile) < 2:
        if n >= 2:
            bblk = max(d for d in range(1, pl.cdiv(n, 2) + 1) if n % d == 0)
        elif hw > 128:
            tile = pl.cdiv(pl.cdiv(hw, 2), 128) * 128

    return bblk, tile, vmem_cap


# ---------------------------------------------------------------------------
# Wrappers
# ---------------------------------------------------------------------------
def fold_bn_into_conv(weight, gamma, beta, running_mean, running_var,
                      eps=1e-5, compute_dtype=jnp.float32):
    """Fold eval-mode BatchNorm2d into the 1x1 conv: returns (w2d, bias2d).

    Call once (hoisted out of the per-step hot path). w2d is (Cout, Cin) in
    compute_dtype (match activations, e.g. bf16); bias2d is (Cout, 1) f32.
    """
    cout, cin = weight.shape[0], weight.shape[1]
    inv_std = 1.0 / jnp.sqrt(running_var.astype(jnp.float32) + eps)
    scale = gamma.astype(jnp.float32) * inv_std                        # (Cout,)
    bias = beta.astype(jnp.float32) - running_mean.astype(jnp.float32) * scale
    w2d = weight.reshape(cout, cin).astype(jnp.float32) * scale[:, None]
    return w2d.astype(compute_dtype), bias.reshape(cout, 1)


def adjust_layer_folded(x_nchw, w2d, bias2d, *, max_tile_cols=8192):
    """Apply folded 1x1 conv + BN. NCHW in, NCHW out, output dtype = x dtype."""
    n, cin, h, w = x_nchw.shape
    cout = w2d.shape[0]
    hw = h * w
    itemsize = jnp.dtype(x_nchw.dtype).itemsize

    bblk, tile, vmem_cap = _plan_blocks(n, cin, cout, hw, itemsize, max_tile_cols)
    grid = (pl.cdiv(n, bblk), pl.cdiv(hw, tile))

    # Scoped-VMEM limit: double-buffered x/out blocks + (double-buffered) weight/bias
    # + generous slack, clamped below physical capacity.  Needed on v5e (16 MiB default).
    x_blk = bblk * cin * max(tile, 128) * itemsize
    o_blk = bblk * cout * max(tile, 128) * itemsize
    need = 2 * (x_blk + o_blk) + 2 * cout * max(cin, 128) * itemsize + 2 * cout * 128 * 4
    vmem_limit = int(min(vmem_cap * 9 // 10, max(need + (8 << 20), 32 << 20)))

    cost = pl.CostEstimate(
        flops=2 * n * hw * cout * cin,
        transcendentals=0,
        bytes_accessed=(n * cin * hw + n * cout * hw) * itemsize
                       + cout * cin * itemsize + cout * 4,
    )

    # Free views: NCHW -> (N, Cin, HW); output (N, Cout, HW) -> NCHW.
    x3 = x_nchw.reshape(n, cin, hw)

    out3 = pl.pallas_call(
        _adjust_kernel,
        out_shape=jax.ShapeDtypeStruct((n, cout, hw), x_nchw.dtype),
        grid_spec=pltpu.PrefetchScalarGridSpec(
            num_scalar_prefetch=0,
            grid=grid,
            in_specs=[
                pl.BlockSpec((cout, cin), lambda b, j: (0, 0)),        # folded weight
                pl.BlockSpec((cout, 1), lambda b, j: (0, 0)),          # folded bias (f32)
                pl.BlockSpec((bblk, cin, tile), lambda b, j: (b, 0, j)),
            ],
            out_specs=pl.BlockSpec((bblk, cout, tile), lambda b, j: (b, 0, j)),
        ),
        compiler_params=pltpu.CompilerParams(
            dimension_semantics=("parallel", "parallel"),
            vmem_limit_bytes=vmem_limit),
        cost_estimate=cost,
    )(w2d, bias2d, x3)

    return out3.reshape(n, cout, h, w)


def adjust_layer(x_nchw, weight, gamma, beta, running_mean, running_var,
                 eps=1e-5, max_tile_cols=8192):
    """Convenience path: fold BN then run the Pallas kernel (prefer pre-folding)."""
    w2d, bias2d = fold_bn_into_conv(weight, gamma, beta, running_mean, running_var,
                                    eps=eps, compute_dtype=x_nchw.dtype)
    return adjust_layer_folded(x_nchw, w2d, bias2d, max_tile_cols=max_tile_cols)


# ---------------------------------------------------------------------------
# Test harness
# ---------------------------------------------------------------------------
def init_adjust_params(key, in_channels, out_channels):
    """Deterministic synthetic parameters for each AdjustLayer branch."""
    params = []
    for cin, cout in zip(in_channels, out_channels):
        k1, k2, k3, k4, k5, key = jax.random.split(key, 6)
        params.append(dict(
            weight=jax.random.normal(k1, (cout, cin, 1, 1), jnp.float32) * 0.1,
            gamma=1.0 + 0.1 * jax.random.normal(k2, (cout,), jnp.float32),
            beta=0.1 * jax.random.normal(k3, (cout,), jnp.float32),
            running_mean=0.1 * jax.random.normal(k4, (cout,), jnp.float32),
            running_var=jnp.abs(1.0 + 0.1 * jax.random.normal(k5, (cout,), jnp.float32)),
        ))
    return params


def _reference_adjust(x, p, eps=1e-5):
    # Pure-JAX reference: 1x1 conv (no bias) + eval-mode BN on NCHW.
    cout, cin, _, _ = p["weight"].shape
    w2d = p["weight"].reshape(cout, cin)
    y = jnp.einsum("nchw,oc->nohw", x, w2d)
    inv_std = 1.0 / jnp.sqrt(p["running_var"] + eps)
    scale = (p["gamma"] * inv_std).reshape(1, cout, 1, 1)
    bias = (p["beta"] - p["running_mean"] * p["gamma"] * inv_std).reshape(1, cout, 1, 1)
    return y * scale + bias


if __name__ == "__main__":
    key = jax.random.PRNGKey(0)
    in_channels = [4, 8]
    out_channels = [8, 16]
    n, h, w = 2, 16, 16

    kf, kp = jax.random.split(key)
    feat_keys = jax.random.split(kf, len(in_channels))
    features = [
        jax.random.normal(feat_keys[i], (n, in_channels[i], h, w), jnp.float32)
        for i in range(len(in_channels))
    ]
    params = init_adjust_params(kp, in_channels, out_channels)

    # Hot path: BN fold hoisted (done once per branch), only the folded kernel is jitted.
    run = jax.jit(adjust_layer_folded)

    outs = []
    for x, p in zip(features, params):
        w2d, b2d = fold_bn_into_conv(p["weight"], p["gamma"], p["beta"],
                                     p["running_mean"], p["running_var"],
                                     compute_dtype=x.dtype)
        o = run(x, w2d, b2d)
        outs.append(jax.block_until_ready(o))

    # Sanity check vs. pure-JAX reference (f32 inputs -> tight tolerance).
    for o, x, p in zip(outs, features, params):
        ref = _reference_adjust(x, p)
        tol = 1e-4 if x.dtype == jnp.float32 else 2e-2
        assert o.shape == ref.shape
        assert jnp.allclose(o.astype(jnp.float32), ref, atol=tol, rtol=tol), \
            "mismatch vs reference"

    print("KERNEL_OK")
</pallas_src>

<mosaic_0001>
module attributes {stable_mosaic.version = 11 : i64} {
  func.func @_adjust_kernel(%arg0: i32, %arg1: i32, %arg2: memref<8x4xf32, #tpu.memory_space<vmem>>, %arg3: memref<8x1xf32, #tpu.memory_space<vmem>>, %arg4: memref<1x4x256xf32, #tpu.memory_space<vmem>>, %arg5: memref<1x8x256xf32, #tpu.memory_space<vmem>>) attributes {dimension_semantics = [#tpu.dimension_semantics<parallel>, #tpu.dimension_semantics<parallel>], iteration_bounds = array<i64: 2, 1>, scalar_prefetch = 0 : i64, scratch_operands = 0 : i64, tpu.core_type = #tpu.core_type<tc>, window_params = [{pipeline_mode = #tpu.pipeline_mode<synchronous>, transform_indices = @transform_0, window_bounds = array<i64: 8, 4>}, {pipeline_mode = #tpu.pipeline_mode<synchronous>, transform_indices = @transform_1, window_bounds = array<i64: 8, 1>}, {transform_indices = @transform_2, window_bounds = array<i64: 1, 4, 256>}, {transform_indices = @transform_3, window_bounds = array<i64: 1, 8, 256>}]} {
    %c0 = arith.constant 0 : index
    %c0_0 = arith.constant 0 : index
    %0 = vector.load %arg2[%c0, %c0_0] : memref<8x4xf32, #tpu.memory_space<vmem>>, vector<8x4xf32>
    %c0_1 = arith.constant 0 : index
    %c0_2 = arith.constant 0 : index
    %1 = vector.load %arg3[%c0_1, %c0_2] : memref<8x1xf32, #tpu.memory_space<vmem>>, vector<8x1xf32>
    %c0_3 = arith.constant 0 : index
    %c0_4 = arith.constant 0 : index
    %c0_5 = arith.constant 0 : index
    %2 = vector.load %arg4[%c0_3, %c0_4, %c0_5] : memref<1x4x256xf32, #tpu.memory_space<vmem>>, vector<1x4x256xf32>
    %3 = vector.shape_cast %2 : vector<1x4x256xf32> to vector<4x256xf32>
    %cst = arith.constant dense<0.000000e+00> : vector<8x256xf32>
    %4 = tpu.matmul %0, %3, %cst {dimension_numbers = #tpu.dot_dimension_numbers<[1], [0], [0], [1], [0, 0, 1, 1], [], []>} : vector<8x4xf32>, vector<4x256xf32>, vector<8x256xf32> -> vector<8x256xf32>
    %5 = vector.broadcast %1 : vector<8x1xf32> to vector<8x256xf32>
    %6 = arith.addf %4, %5 : vector<8x256xf32>
    %c0_6 = arith.constant 0 : index
    %c0_7 = arith.constant 0 : index
    %c0_8 = arith.constant 0 : index
    %7 = vector.load %arg5[%c0_6, %c0_7, %c0_8] : memref<1x8x256xf32, #tpu.memory_space<vmem>>, vector<1x8x256xf32>
    %8 = vector.shape_cast %7 : vector<1x8x256xf32> to vector<8x256xf32>
    %9 = vector.shape_cast %6 : vector<8x256xf32> to vector<1x8x256xf32>
    tpu.vector_store %arg5[%c0_6, %c0_7, %c0_8], %9 {strides = array<i32>} : memref<1x8x256xf32, #tpu.memory_space<vmem>>, vector<1x8x256xf32>,
    return
  }
  func.func @transform_0(%arg0: i32, %arg1: i32) -> (i32, i32) {
    %c0_i32 = arith.constant 0 : i32
    %c0_i32_0 = arith.constant 0 : i32
    %c0_i32_1 = arith.constant 0 : i32
    return %c0_i32, %c0_i32_0 : i32, i32
  }
  func.func @transform_1(%arg0: i32, %arg1: i32) -> (i32, i32) {
    %c0_i32 = arith.constant 0 : i32
    %c0_i32_0 = arith.constant 0 : i32
    %c0_i32_1 = arith.constant 0 : i32
    return %c0_i32, %c0_i32_0 : i32, i32
  }
  func.func @transform_2(%arg0: i32, %arg1: i32) -> (i32, i32, i32) {
    %c0_i32 = arith.constant 0 : i32
    %c0_i32_0 = arith.constant 0 : i32
    return %arg0, %c0_i32, %arg1 : i32, i32, i32
  }
  func.func @transform_3(%arg0: i32, %arg1: i32) -> (i32, i32, i32) {
    %c0_i32 = arith.constant 0 : i32
    %c0_i32_0 = arith.constant 0 : i32
    return %arg0, %c0_i32, %arg1 : i32, i32, i32
  }
}

</mosaic_0001>

<llo_original>
// kernel: adjust_layer_folded.1
$region0: #{adjust_layer_folded.1}
  #allocation0 [shape = 'u32[]', space=smem, size = 0x4, offset = 0x4, fixed_abs, tag = 'smem constant byte address 0x4 - core index']
  #allocation1 [shape = 'u32[144,128]{1,0:T(1,128)}', space=vmem, size = 0x12000, scoped, tag = 'internal scratch']
  %s0 = inlined_call_operand.vmem [shape: f32[8,4], index: 0, kind: input, shape index: {}]
  %s1 = inlined_call_operand.vmem [shape: f32[8,1], index: 1, kind: input, shape index: {}]
  %s2 = inlined_call_operand.vmem [shape: f32[2,4,256], index: 2, kind: input, shape index: {}]
  %s3 = inlined_call_operand.vmem [shape: f32[2,8,256], index: 3, kind: output, shape index: {}]
  %s4 = sld [smem:[#allocation0]]
  $region45: #{adjust_layer_folded.1} parent=0
    _
  %s6 = ssub.s32 1, %s4
  %s7 = scalar_select 0, %s6, %s4
  loop: start=0, step=1, limit=4
  $region2: #{adjust_layer_folded.1} parent=0 // loop_pre_header
    _
  $region3: #{adjust_layer_folded.1} parent=0 // loop_header
    %s9 = sphi 0, %s13
    %p10 = scmp.ge.s32.totalorder %s9, 4
    %s16 = sphi 0, %s28
    %s17 = sphi 0, %s24
    %s18 = sphi 0, %s16
    %s19 = sphi 0, %s17
    %s20 = sphi 0, %s18
    %s21 = sphi 0, %s19
    %s29 = sphi 0, %s29
    %s31 = sphi 0, %s29
    %s32 = sphi 0, %s31
    %s46 = sphi 0, %s32
    %s50 = sphi 0, %s50
    %s52 = sphi 0, %s50
    %s53 = sphi 0, %s52
    %s67 = sphi 0, %s53
    %s75 = sphi 0, %s77
    %s78 = sphi 0, %s75
    %s79 = sphi 0, %s78
    %s95 = sphi 0, %s79
    %s103 = sphi 0, %s105
    %s106 = sphi 0, %s103
    %s107 = sphi 0, %s106
    %s123 = sphi 0, %s107
  $region4: #{adjust_layer_folded.1} parent=0 // loop_header_branch
    %12 = sbr.rel (%p10) target = $region8
  $region5: #{adjust_layer_folded.1} parent=0 // loop_body
    %s14 = ssub.s32 %s9, 1
    %s15 = ssub.s32 %s9, 2
    %s22 = sadd.s32 1, %s17
    %p23 = scmp.ge.s32.totalorder %s22, 1
    %s24 = scalar_select %p23, 0, %s22
    %s25 = sadd.s32 1, %s16
    %s26 = scalar_select %p23, %s25, %s16
    %p27 = scmp.ge.s32.totalorder %s26, 2
    %s28 = scalar_select %p27, 0, %s26
    %s30 = sadd.s32 %s29, 1
    %p33 = scmp.eq.s32.totalorder %s9, 1
    %p34 = scmp.ne.s32.totalorder %s29, %s31
    %p35 = scmp.eq.s32.totalorder %s9, 0
    %p36 = por %p34, %p35
    %p37 = scmp.ne.s32.totalorder %s29, %s31
    %p38 = scmp.eq.s32.totalorder %s14, 1
    %p39 = por %p37, %p38
    %p40 = scmp.ne.s32.totalorder %s31, %s32
    %p41 = scmp.eq.s32.totalorder %s14, 0
    %p42 = por %p40, %p41
    %p43 = scmp.ne.s32.totalorder %s31, %s32
    %p44 = scmp.eq.s32.totalorder %s15, 1
    %p45 = por %p43, %p44
    %p47 = scmp.ne.s32.totalorder %s32, %s46
    %p48 = scmp.eq.s32.totalorder %s15, 0
    %p49 = por %p47, %p48
    %s51 = sadd.s32 %s50, 1
    %p54 = scmp.eq.s32.totalorder %s9, 1
    %p55 = scmp.ne.s32.totalorder %s50, %s52
    %p56 = scmp.eq.s32.totalorder %s9, 0
    %p57 = por %p55, %p56
    %p58 = scmp.ne.s32.totalorder %s50, %s52
    %p59 = scmp.eq.s32.totalorder %s14, 1
    %p60 = por %p58, %p59
    %p61 = scmp.ne.s32.totalorder %s52, %s53
    %p62 = scmp.eq.s32.totalorder %s14, 0
    %p63 = por %p61, %p62
    %p64 = scmp.ne.s32.totalorder %s52, %s53
    %p65 = scmp.eq.s32.totalorder %s15, 1
    %p66 = por %p64, %p65
    %p68 = scmp.ne.s32.totalorder %s53, %s67
    %p69 = scmp.eq.s32.totalorder %s15, 0
    %p70 = por %p68, %p69
    %s71 = ssub.s32 %s16, %s28
    %s72 = ssub.s32 %s17, %s24
    %s73 = sor.u32 %s71, %s72
    %p74 = scmp.eq.s32.totalorder %s73, 0
    %s76 = sadd.s32 %s75, 1
    %s77 = scalar_select %p74, %s75, %s76
    %p80 = pneg %p74
    %p81 = scmp.eq.s32.totalorder %s9, 1
    %p82 = por %p80, %p81
    %p83 = scmp.ne.s32.totalorder %s75, %s78
    %p84 = scmp.eq.s32.totalorder %s9, 0
    %p85 = por %p83, %p84
    %p86 = scmp.ne.s32.totalorder %s75, %s78
    %p87 = scmp.eq.s32.totalorder %s14, 1
    %p88 = por %p86, %p87
    %p89 = scmp.ne.s32.totalorder %s78, %s79
    %p90 = scmp.eq.s32.totalorder %s14, 0
    %p91 = por %p89, %p90
    %p92 = scmp.ne.s32.totalorder %s78, %s79
    %p93 = scmp.eq.s32.totalorder %s15, 1
    %p94 = por %p92, %p93
    %p96 = scmp.ne.s32.totalorder %s79, %s95
    %p97 = scmp.eq.s32.totalorder %s15, 0
    %p98 = por %p96, %p97
    %s99 = ssub.s32 %s16, %s28
    %s100 = ssub.s32 %s17, %s24
    %s101 = sor.u32 %s99, %s100
    %p102 = scmp.eq.s32.totalorder %s101, 0
    %s104 = sadd.s32 %s103, 1
    %s105 = scalar_select %p102, %s103, %s104
    %p108 = pneg %p102
    %p109 = scmp.eq.s32.totalorder %s9, 1
    %p110 = por %p108, %p109
    %p111 = scmp.ne.s32.totalorder %s103, %s106
    %p112 = scmp.eq.s32.totalorder %s9, 0
    %p113 = por %p111, %p112
    %p114 = scmp.ne.s32.totalorder %s103, %s106
    %p115 = scmp.eq.s32.totalorder %s14, 1
    %p116 = por %p114, %p115
    %p117 = scmp.ne.s32.totalorder %s106, %s107
    %p118 = scmp.eq.s32.totalorder %s14, 0
    %p119 = por %p117, %p118
    %p120 = scmp.ne.s32.totalorder %s106, %s107
    %p121 = scmp.eq.s32.totalorder %s15, 1
    %p122 = por %p120, %p121
    %p124 = scmp.ne.s32.totalorder %s107, %s123
    %p125 = scmp.eq.s32.totalorder %s15, 0
    %p126 = por %p124, %p125
    %p127 = scmp.le.s32.totalorder 1, %s9
    %p128 = scmp.lt.s32.totalorder %s9, 3
    %p129 = pnand %p127, %p128
    %p130 = pneg %p129
    // Predicated region
    $region9: #{adjust_layer_folded.1} parent=5 // pred_check
      _
    $region10: #{adjust_layer_folded.1} parent=5 // pred_check_branch
      %132 = sbr.rel (%p129) target = $region12
    $region11: #{adjust_layer_folded.1} parent=5 // pred_region
      %s133 = ssub.s32 %s9, 1
      // Predicated region
      $region13: #{adjust_layer_folded.1} parent=11 // pred_check
        %p134 = pneg %p42
      $region14: #{adjust_layer_folded.1} parent=11 // pred_check_branch
        %136 = sbr.rel (%p134) target = $region16
      $region15: #{adjust_layer_folded.1} parent=11 // pred_region
        _
      $region16: #{adjust_layer_folded.1} parent=11 // pred_fallthru
        _
      // Predicated region
      $region17: #{adjust_layer_folded.1} parent=11 // pred_check
        %p137 = pneg %p63
      $region18: #{adjust_layer_folded.1} parent=11 // pred_check_branch
        %139 = sbr.rel (%p137) target = $region20
      $region19: #{adjust_layer_folded.1} parent=11 // pred_region
        _
      $region20: #{adjust_layer_folded.1} parent=11 // pred_fallthru
        _
    $region12: #{adjust_layer_folded.1} parent=5 // pred_fallthru
      _
    %p140 = scmp.lt.s32.totalorder %s9, 2
    // Predicated region
    $region21: #{adjust_layer_folded.1} parent=5 // pred_check
      %p141 = pneg %p140
    $region22: #{adjust_layer_folded.1} parent=5 // pred_check_branch
      %143 = sbr.rel (%p141) target = $region24
    $region23: #{adjust_layer_folded.1} parent=5 // pred_region
      // Predicated region
      $region25: #{adjust_layer_folded.1} parent=23 // pred_check
        %p144 = pneg %p85
      $region26: #{adjust_layer_folded.1} parent=23 // pred_check_branch
        %146 = sbr.rel (%p144) target = $region28
      $region27: #{adjust_layer_folded.1} parent=23 // pred_region
        %s147 = smul.u32 2, %s17
        %p148 = scmp.lt.s32.totalorder %s16, 1
        %s149 = scalar_select %p148, %s16, 1
        %p150 = scmp.lt.s32.totalorder %s147, 1
        %s151 = scalar_select %p150, %s147, 1
        %s152 = smul.addr %s149, 2
        %s153 = sadd.s32 %s151, %s152
        %s154 = smul.addr %s153, 4
        %s155 = scalar_lea.vmem %s2, %s154
        %s156 = smul.u32 2, %s17
      $region28: #{adjust_layer_folded.1} parent=23 // pred_fallthru
        _
    $region24: #{adjust_layer_folded.1} parent=5 // pred_fallthru
      _
    %p157 = scmp.le.s32.totalorder 1, %s9
    %p158 = scmp.lt.s32.totalorder %s9, 3
    %p159 = pnand %p157, %p158
    %p160 = pneg %p159
    // Predicated region
    $region29: #{adjust_layer_folded.1} parent=5 // pred_check
      _
    $region30: #{adjust_layer_folded.1} parent=5 // pred_check_branch
      %162 = sbr.rel (%p159) target = $region32
    $region31: #{adjust_layer_folded.1} parent=5 // pred_region
      %s163 = ssub.s32 %s9, 1
      %p164 = pneg %p42
      %p165 = pneg %p39
      %p166 = pneg %p63
      %p167 = pneg %p60
      %s168 = smul.u32 2, %s19
      %p169 = scmp.lt.s32.totalorder %s18, 1
      %s170 = scalar_select %p169, %s18, 1
      %p171 = scmp.lt.s32.totalorder %s168, 1
      %s172 = scalar_select %p171, %s168, 1
      %s173 = smul.addr %s170, 2
      %s174 = sadd.s32 %s172, %s173
      %s175 = smul.addr %s174, 4
      %s176 = scalar_lea.vmem %s2, %s175
      %p177 = pneg %p91
      %p178 = pneg %p88
      %p179 = pneg %p119
      %p180 = pneg %p116
      %s181 = smul.u32 2, %s19
      %p182 = scmp.lt.s32.totalorder %s18, 1
      %s183 = scalar_select %p182, %s18, 1
      %p184 = scmp.lt.s32.totalorder %s181, 1
      %s185 = scalar_select %p184, %s181, 1
      %s186 = smul.addr %s183, 2
      %s187 = sadd.s32 %s185, %s186
      %s188 = smul.addr %s187, 8
      %s189 = scalar_lea.vmem %s3, %s188
      %s190 = smul.u32 2, %s19
      %p191 = scmp.lt.s32.totalorder %s18, 1
      %s192 = scalar_select %p191, %s18, 1
      %p193 = scmp.lt.s32.totalorder %s190, 1
      %s194 = scalar_select %p193, %s190, 1
      %s195 = smul.addr %s192, 2
      %s196 = sadd.s32 %s194, %s195
      %s197 = smul.addr %s196, 4
      %s198 = scalar_lea.vmem %s2, %s197
      %s199 = smul.u32 2, %s19
      %s200 = smul.u32 2, %s19
      %p201 = scmp.lt.s32.totalorder %s18, 1
      %s202 = scalar_select %p201, %s18, 1
      %p203 = scmp.lt.s32.totalorder %s200, 1
      %s204 = scalar_select %p203, %s200, 1
      %s205 = smul.addr %s202, 2
      %s206 = sadd.s32 %s204, %s205
      %s207 = smul.addr %s206, 8
      %s208 = scalar_lea.vmem %s3, %s207
      %s209 = smul.u32 2, %s19
      %v210 = vld [vmem:[%s0] sm:$0xff]
      %v211 = vld [vmem:[%s1] sm:$0xff]
      %v212 = vld [vmem:[%s198] sm:$0xff]
      %214 = vset.pattern.permute.xlu0 0
      %215 = vperm.xlu0 %214, %v211
      %v216 = vpop.permute.xlu0 %215
      %v219 = vcombine.high %v212, %v212
      %vm220 = vcmask 31744
      %v222 = vsel %vm220, %v210, 0
      %vm224 = vcmask 1043456
      %v225 = vsel %vm224, %v212, 0
      %v227 = vsel %vm224, %v219, 0
      %229 = vmatprep.subr.mxu0 %v227
      %230 = vmatpush1.msra.mxu0 %v225
      %231 = vmatprep.subr.mxu0 0.0
      %232 = vmatpush1.msra.mxu0 0.0
      %233 = vmatprep.subr.mxu0 0.0
      %234 = vmatpush1.msra.mxu0 0.0
      %235 = vmatprep.subr.mxu0 0.0
      %236 = vmatpush1.msra.mxu0 0.0
      %237 = vmatprep.subr.mxu0 0.0
      %238 = vmatpush1.msra.mxu0 0.0
      %239 = vmatprep.subr.mxu0 0.0
      %240 = vmatpush1.msra.mxu0 0.0
      %241 = vmatprep.subr.mxu0 0.0
      %242 = vmatpush1.msra.mxu0 0.0
      %243 = vmatprep.subr.mxu0 0.0
      %244 = vmatpush1.msra.mxu0 0.0
      %245 = vmatprep.subr.mxu0 0.0
      %246 = vmatpush1.msra.mxu0 0.0
      %247 = vmatprep.subr.mxu0 0.0
      %248 = vmatpush1.msra.mxu0 0.0
      %249 = vmatprep.subr.mxu0 0.0
      %250 = vmatpush1.msra.mxu0 0.0
      %251 = vmatprep.subr.mxu0 0.0
      %252 = vmatpush1.msra.mxu0 0.0
      %253 = vmatprep.subr.mxu0 0.0
      %254 = vmatpush1.msra.mxu0 0.0
      %255 = vmatprep.subr.mxu0 0.0
      %256 = vmatpush1.msra.mxu0 0.0
      %257 = vmatprep.subr.mxu0 0.0
      %258 = vmatpush1.msra.mxu0 0.0
      %259 = vmatprep.subr.mxu0 0.0
      %260 = vmatpush1.msra.mxu0 0.0
      %261 = vmatprep.subr.mxu0 0.0
      %262 = vmatpush1.msra.mxu0 0.0
      %263 = vmatprep.subr.mxu0 0.0
      %264 = vmatpush1.msra.mxu0 0.0
      %265 = vmatprep.subr.mxu0 0.0
      %266 = vmatpush1.msra.mxu0 0.0
      %267 = vmatprep.subr.mxu0 0.0
      %268 = vmatpush1.msra.mxu0 0.0
      %269 = vmatprep.subr.mxu0 0.0
      %270 = vmatpush1.msra.mxu0 0.0
      %271 = vmatprep.subr.mxu0 0.0
      %272 = vmatpush1.msra.mxu0 0.0
      %273 = vmatprep.subr.mxu0 0.0
      %274 = vmatpush1.msra.mxu0 0.0
      %275 = vmatprep.subr.mxu0 0.0
      %276 = vmatpush1.msra.mxu0 0.0
      %277 = vmatprep.subr.mxu0 0.0
      %278 = vmatpush1.msra.mxu0 0.0
      %279 = vmatprep.subr.mxu0 0.0
      %280 = vmatpush1.msra.mxu0 0.0
      %281 = vmatprep.subr.mxu0 0.0
      %282 = vmatpush1.msra.mxu0 0.0
      %283 = vmatprep.subr.mxu0 0.0
      %284 = vmatpush1.msra.mxu0 0.0
      %285 = vmatprep.subr.mxu0 0.0
      %286 = vmatpush1.msra.mxu0 0.0
      %287 = vmatprep.subr.mxu0 0.0
      %288 = vmatpush1.msra.mxu0 0.0
      %289 = vmatprep.subr.mxu0 0.0
      %290 = vmatpush1.msra.mxu0 0.0
      %291 = vmatprep.subr.mxu0 0.0
      %292 = vmatpush1.msra.mxu0 0.0
      %293 = vmatprep.mubr.f32.mxu0 0.0
      %294 = vmatmul.mubr.f32.gmra.mrb[0].mxu0 %v222
      %v295 = vpop.f32.mrb[0].mxu0
      %v296 = vadd.f32 %v216, %v295
      %v297 = vpop.f32.mrb[0].mxu0
      %v298 = vadd.f32 %v216, %v297
      %299 = vdwg.mxu0
      %300 = vst [vmem:[%s208] sm:$0xff] %v296
      %301 = vst [vmem:[%s208 + $0x8] sm:$0xff] %v298
      %s302 = smul.u32 2, %s19
      %p303 = scmp.lt.s32.totalorder %s18, 1
      %s304 = scalar_select %p303, %s18, 1
      %p305 = scmp.lt.s32.totalorder %s302, 1
      %s306 = scalar_select %p305, %s302, 1
      %s307 = smul.addr %s304, 2
      %s308 = sadd.s32 %s306, %s307
      %s309 = smul.addr %s308, 8
      %s310 = scalar_lea.vmem %s3, %s309
      // Predicated region
      $region33: #{adjust_layer_folded.1} parent=31 // pred_check
        %p311 = pneg %p116
      $region34: #{adjust_layer_folded.1} parent=31 // pred_check_branch
        %313 = sbr.rel (%p311) target = $region36
      $region35: #{adjust_layer_folded.1} parent=31 // pred_region
        %s314 = smul.u32 2, %s19
      $region36: #{adjust_layer_folded.1} parent=31 // pred_fallthru
        _
    $region32: #{adjust_layer_folded.1} parent=5 // pred_fallthru
      _
    %p315 = scmp.le.s32.totalorder 2, %s9
    // Predicated region
    $region37: #{adjust_layer_folded.1} parent=5 // pred_check
      %p316 = pneg %p315
    $region38: #{adjust_layer_folded.1} parent=5 // pred_check_branch
      %318 = sbr.rel (%p316) target = $region40
    $region39: #{adjust_layer_folded.1} parent=5 // pred_region
      %s319 = ssub.s32 %s9, 2
      // Predicated region
      $region41: #{adjust_layer_folded.1} parent=39 // pred_check
        %p320 = pneg %p122
      $region42: #{adjust_layer_folded.1} parent=39 // pred_check_branch
        %322 = sbr.rel (%p320) target = $region44
      $region43: #{adjust_layer_folded.1} parent=39 // pred_region
        %s323 = smul.u32 2, %s21
        %p324 = scmp.lt.s32.totalorder %s20, 1
        %s325 = scalar_select %p324, %s20, 1
        %p326 = scmp.lt.s32.totalorder %s323, 1
        %s327 = scalar_select %p326, %s323, 1
        %s328 = smul.addr %s325, 2
        %s329 = sadd.s32 %s327, %s328
        %s330 = smul.addr %s329, 8
        %s331 = scalar_lea.vmem %s3, %s330
      $region44: #{adjust_layer_folded.1} parent=39 // pred_fallthru
        _
    $region40: #{adjust_layer_folded.1} parent=5 // pred_fallthru
      _
  $region6: #{adjust_layer_folded.1} parent=0 // loop_footer
    %s13 = sadd.s32 1, %s9
  $region7: #{adjust_layer_folded.1} parent=0 // loop_footer_branch
    %8 = sbr.rel target = $region3
  $region8: #{adjust_layer_folded.1} parent=0 // loop_exit
    _

</llo_original>
